<compile_context>
chip_gen: v6e
topology: v6e:2x2x1
jax: 0.10.0
libtpu: 0.0.40
codegen_flags: <defaults>
</compile_context>

<pallas_src>
import jax
import jax.numpy as jnp
from jax import lax
from jax.experimental import pallas as pl
from jax.experimental.pallas import tpu as pltpu

# ----- model hyper-parameters (taken from the PyTorch script) ----------------
SENTENCES = ['我 喜欢 玩具', '我 爱 爸爸', '我 讨厌 挨打']
WORD_LIST = sorted(set(' '.join(SENTENCES).split()))   # deterministic order
VOC_SIZE = len(WORD_LIST)        # 7
EMBEDDING_SIZE = 2
N_STEP = 2
N_HIDDEN = 2
BATCH = 3                        # one training example per sentence

# ----- TPU padding / tiling constants ----------------------------------------
LANE = 128                       # lane width of a vreg
MAX_B_TILE = 256                 # batch rows per grid step (full MXU M-pass on
                                 # v6e/v7x; multiple of 128 so also v5e-friendly)
VOC_PAD = LANE                   # 7  -> 128  (per-step one-hot width)
HID_PAD = LANE                   # 2  -> 128
OUT_PAD = LANE                   # 7  -> 128  (lane-dense output store)
ONEHOT_W = N_STEP * VOC_PAD      # 256 (multi-hot / folded-W1 contraction width)


def _round_up(x, m):
    return ((x + m - 1) // m) * m


def nplm_kernel(x_ref, w1f_ref, b1_ref, w2_ref, b2_ref, out_ref):
    """One batch tile of the NPLM forward, fully lane-dense in VMEM."""
    bt, n_step = x_ref.shape
    onehot_w = w1f_ref.shape[0]               # N_STEP * VOC_PAD

    # --- multi-hot built directly in bf16 (offsets pre-added on the host) ----
    x_off = x_ref[...]                         # (bt, n_step) int32, lane offsets baked in
    lane = lax.broadcasted_iota(jnp.int32, (bt, onehot_w), 1)
    onehot = (lane == x_off[:, 0:1]).astype(jnp.bfloat16)
    for s in range(1, n_step):                 # static & tiny (n_step == 2)
        onehot += (lane == x_off[:, s:s + 1]).astype(jnp.bfloat16)

    # --- fused embedding + linear1 (+ tanh): one MXU matmul ------------------
    # W1_folded row (s*VOC_PAD + v) == C[v] @ W1[s*emb:(s+1)*emb, :]
    hidden = jnp.tanh(
        jnp.dot(onehot, w1f_ref[...], preferred_element_type=jnp.float32)
        + b1_ref[...]
    )                                          # (bt, HID_PAD) f32

    # --- linear2, straight into the lane-dense output block ------------------
    out_ref[...] = (
        jnp.dot(hidden.astype(jnp.bfloat16), w2_ref[...],
                preferred_element_type=jnp.float32) + b2_ref[...]
    )                                          # (bt, OUT_PAD) f32


def _pack_params(c_emb, w1, b1, w2, b2):
    """Host-side one-time packing: fold C into W1, lane-dense pads, bf16 MXU inputs."""
    emb = c_emb.shape[1]
    # Fold block-diagonal embedding into linear1 (compose in f32, quantize once).
    w1_folded = jnp.zeros((ONEHOT_W, HID_PAD), jnp.float32)
    for s in range(N_STEP):
        blk = c_emb @ w1[s * emb:(s + 1) * emb, :]          # (voc, n_hidden)
        w1_folded = w1_folded.at[s * VOC_PAD:s * VOC_PAD + VOC_SIZE,
                                 :N_HIDDEN].set(blk)
    b1_p = jnp.zeros((1, HID_PAD), jnp.float32).at[:, :N_HIDDEN].set(
        b1.reshape(1, -1))
    w2_p = jnp.zeros((HID_PAD, OUT_PAD), jnp.float32)
    w2_p = w2_p.at[:N_HIDDEN, :VOC_SIZE].set(w2)
    b2_p = jnp.zeros((1, OUT_PAD), jnp.float32).at[:, :VOC_SIZE].set(
        b2.reshape(1, -1))
    return (w1_folded.astype(jnp.bfloat16), b1_p,
            w2_p.astype(jnp.bfloat16), b2_p)


def nplm_forward(x_ids, c_emb, w1, b1, w2, b2):
    """Wrapper: pad to lane/sublane granularity, grid over large batch tiles."""
    batch = x_ids.shape[0]
    # Big tiles amortize per-step overhead; clamp so tiny demo batches don't
    # over-pad. For realistic batches (>= 512) this yields >=2 grid steps so
    # both v7x TensorCores get work via dimension_semantics=("parallel",).
    b_tile = min(MAX_B_TILE, _round_up(batch, 8))
    b_pad = pl.cdiv(batch, b_tile) * b_tile

    # Pre-add the per-step lane offsets (s * VOC_PAD) to the token ids; pad
    # rows with -1 so their multi-hot is all-zero (results are sliced off).
    offsets = (jnp.arange(N_STEP, dtype=jnp.int32) * VOC_PAD)[None, :]
    x_off = x_ids.astype(jnp.int32) + offsets
    x_p = jnp.full((b_pad, N_STEP), -1, jnp.int32).at[:batch].set(x_off)

    w1f, b1_p, w2_p, b2_p = _pack_params(c_emb, w1, b1, w2, b2)

    grid = (b_pad // b_tile,)
    cost = pl.CostEstimate(
        flops=int(2 * b_pad * (ONEHOT_W * HID_PAD + HID_PAD * OUT_PAD)),
        transcendentals=int(b_pad * HID_PAD),
        bytes_accessed=int(x_p.size * 4 + w1f.size * 2 + b1_p.size * 4
                           + w2_p.size * 2 + b2_p.size * 4
                           + b_pad * OUT_PAD * 4),
    )

    out_padded = pl.pallas_call(
        nplm_kernel,
        grid=grid,
        in_specs=[
            pl.BlockSpec((b_tile, N_STEP), lambda i: (i, 0)),        # token ids
            pl.BlockSpec((ONEHOT_W, HID_PAD), lambda i: (0, 0)),     # W1_folded
            pl.BlockSpec((1, HID_PAD), lambda i: (0, 0)),            # b1
            pl.BlockSpec((HID_PAD, OUT_PAD), lambda i: (0, 0)),      # W2
            pl.BlockSpec((1, OUT_PAD), lambda i: (0, 0)),            # b2
        ],
        out_specs=pl.BlockSpec((b_tile, OUT_PAD), lambda i: (i, 0)),
        out_shape=jax.ShapeDtypeStruct((b_pad, OUT_PAD), jnp.float32),
        compiler_params=pltpu.CompilerParams(
            dimension_semantics=("parallel",)),   # batch tiles -> both v7x TCs
        cost_estimate=cost,
    )(x_p, w1f, b1_p, w2_p, b2_p)
    return out_padded[:batch, :VOC_SIZE]


# ----- pure-JAX references ----------------------------------------------------
def reference_forward_f32(x_ids, c_emb, w1, b1, w2, b2):
    """Exact f32 semantics of the PyTorch module."""
    feat = c_emb[x_ids].reshape(x_ids.shape[0], N_STEP * EMBEDDING_SIZE)
    hidden = jnp.tanh(feat @ w1 + b1)
    return hidden @ w2 + b2


def reference_forward_bf16(x_ids, c_emb, w1, b1, w2, b2):
    """Emulates the kernel: folded (C@W1) quantized to bf16 once, f32 accumulation."""
    bf16, f32 = jnp.bfloat16, jnp.float32
    emb = c_emb.shape[1]
    folded = jnp.concatenate(
        [c_emb @ w1[s * emb:(s + 1) * emb, :] for s in range(N_STEP)], axis=0)
    folded_q = folded.astype(bf16).astype(f32)          # (n_step*voc, n_hidden)
    hidden_pre = sum(folded_q[x_ids[:, s] + s * VOC_SIZE]
                     for s in range(N_STEP))            # f32 row-sum (multi-hot matmul)
    hidden = jnp.tanh(hidden_pre + b1)
    return jnp.dot(hidden.astype(bf16), w2.astype(bf16),
                   preferred_element_type=f32) + b2


if __name__ == "__main__":
    key = jax.random.PRNGKey(0)
    k_c, k_w1, k_b1, k_w2, k_b2, k_x, k_xl = jax.random.split(key, 7)

    # deterministic synthetic parameters (shapes follow the nn.Module __init__;
    # linear weights stored pre-transposed as (in_features, out_features))
    c_emb = jax.random.normal(k_c, (VOC_SIZE, EMBEDDING_SIZE), jnp.float32)
    w1 = jax.random.normal(k_w1, (N_STEP * EMBEDDING_SIZE, N_HIDDEN),
                           jnp.float32) * 0.5
    b1 = jax.random.normal(k_b1, (1, N_HIDDEN), jnp.float32) * 0.1
    w2 = jax.random.normal(k_w2, (N_HIDDEN, VOC_SIZE), jnp.float32) * 0.5
    b2 = jax.random.normal(k_b2, (1, VOC_SIZE), jnp.float32) * 0.1

    # 1) original toy batch: n_step context words per sentence
    x_ids = jax.random.randint(k_x, (BATCH, N_STEP), 0, VOC_SIZE, jnp.int32)
    out = jax.block_until_ready(nplm_forward(x_ids, c_emb, w1, b1, w2, b2))
    ref_bf16 = reference_forward_bf16(x_ids, c_emb, w1, b1, w2, b2)
    ref_f32 = reference_forward_f32(x_ids, c_emb, w1, b1, w2, b2)
    assert out.shape == (BATCH, VOC_SIZE)
    assert jnp.allclose(out, ref_bf16, atol=1e-2, rtol=1e-2), \
        "mismatch vs bf16-matched (folded) reference"
    assert jnp.allclose(out, ref_f32, atol=5e-2, rtol=5e-2), \
        "mismatch vs f32 module reference"

    # 2) larger batch exercising the multi-step ("parallel") batch grid
    big_batch = 512
    x_big = jax.random.randint(k_xl, (big_batch, N_STEP), 0, VOC_SIZE, jnp.int32)
    out_big = jax.block_until_ready(nplm_forward(x_big, c_emb, w1, b1, w2, b2))
    ref_big = reference_forward_bf16(x_big, c_emb, w1, b1, w2, b2)
    assert out_big.shape == (big_batch, VOC_SIZE)
    assert jnp.allclose(out_big, ref_big, atol=1e-2, rtol=1e-2), \
        "mismatch vs bf16-matched reference (large batch)"

    print("KERNEL_OK")
</pallas_src>

<mosaic_0001>
module attributes {stable_mosaic.version = 11 : i64} {
  func.func @nplm_kernel(%arg0: i32, %arg1: memref<8x2xi32, #tpu.memory_space<vmem>>, %arg2: memref<256x128xbf16, #tpu.memory_space<vmem>>, %arg3: memref<1x128xf32, #tpu.memory_space<vmem>>, %arg4: memref<128x128xbf16, #tpu.memory_space<vmem>>, %arg5: memref<1x128xf32, #tpu.memory_space<vmem>>, %arg6: memref<8x128xf32, #tpu.memory_space<vmem>>) attributes {dimension_semantics = [#tpu.dimension_semantics<parallel>], iteration_bounds = array<i64: 1>, scalar_prefetch = 0 : i64, scratch_operands = 0 : i64, tpu.core_type = #tpu.core_type<tc>, window_params = [{transform_indices = @transform_0, window_bounds = array<i64: 8, 2>}, {pipeline_mode = #tpu.pipeline_mode<synchronous>, transform_indices = @transform_1, window_bounds = array<i64: 256, 128>}, {pipeline_mode = #tpu.pipeline_mode<synchronous>, transform_indices = @transform_2, window_bounds = array<i64: 1, 128>}, {pipeline_mode = #tpu.pipeline_mode<synchronous>, transform_indices = @transform_3, window_bounds = array<i64: 128, 128>}, {pipeline_mode = #tpu.pipeline_mode<synchronous>, transform_indices = @transform_4, window_bounds = array<i64: 1, 128>}, {transform_indices = @transform_5, window_bounds = array<i64: 8, 128>}]} {
    %c0 = arith.constant 0 : index
    %c0_0 = arith.constant 0 : index
    %0 = vector.load %arg1[%c0, %c0_0] : memref<8x2xi32, #tpu.memory_space<vmem>>, vector<8x2xi32>
    %1 = tpu.iota {dimensions = array<i32: 1>} : vector<8x256xi32>
    %2 = vector.extract_strided_slice %0 {offsets = [0, 0], sizes = [8, 1], strides = [1, 1]} : vector<8x2xi32> to vector<8x1xi32>
    %3 = vector.broadcast %2 : vector<8x1xi32> to vector<8x256xi32>
    %4 = arith.cmpi eq, %1, %3 : vector<8x256xi32>
    %5 = arith.extui %4 : vector<8x256xi1> to vector<8x256xi32>
    %6 = arith.sitofp %5 : vector<8x256xi32> to vector<8x256xf32>
    %7 = arith.truncf %6 : vector<8x256xf32> to vector<8x256xbf16>
    %8 = vector.extract_strided_slice %0 {offsets = [0, 1], sizes = [8, 1], strides = [1, 1]} : vector<8x2xi32> to vector<8x1xi32>
    %9 = vector.broadcast %8 : vector<8x1xi32> to vector<8x256xi32>
    %10 = arith.cmpi eq, %1, %9 : vector<8x256xi32>
    %11 = arith.extui %10 : vector<8x256xi1> to vector<8x256xi32>
    %12 = arith.sitofp %11 : vector<8x256xi32> to vector<8x256xf32>
    %13 = arith.truncf %12 : vector<8x256xf32> to vector<8x256xbf16>
    %14 = arith.addf %7, %13 : vector<8x256xbf16>
    %c0_1 = arith.constant 0 : index
    %c0_2 = arith.constant 0 : index
    %15 = vector.load %arg2[%c0_1, %c0_2] : memref<256x128xbf16, #tpu.memory_space<vmem>>, vector<256x128xbf16>
    %cst = arith.constant dense<0.000000e+00> : vector<8x128xf32>
    %16 = tpu.matmul %14, %15, %cst {dimension_numbers = #tpu.dot_dimension_numbers<[1], [0], [0], [1], [0, 0, 1, 1], [], []>} : vector<8x256xbf16>, vector<256x128xbf16>, vector<8x128xf32> -> vector<8x128xf32>
    %c0_3 = arith.constant 0 : index
    %c0_4 = arith.constant 0 : index
    %17 = vector.load %arg3[%c0_3, %c0_4] : memref<1x128xf32, #tpu.memory_space<vmem>>, vector<1x128xf32>
    %18 = vector.broadcast %17 : vector<1x128xf32> to vector<8x128xf32>
    %19 = arith.addf %16, %18 : vector<8x128xf32>
    %20 = math.tanh %19 : vector<8x128xf32>
    %21 = arith.truncf %20 : vector<8x128xf32> to vector<8x128xbf16>
    %c0_5 = arith.constant 0 : index
    %c0_6 = arith.constant 0 : index
    %22 = vector.load %arg4[%c0_5, %c0_6] : memref<128x128xbf16, #tpu.memory_space<vmem>>, vector<128x128xbf16>
    %cst_7 = arith.constant dense<0.000000e+00> : vector<8x128xf32>
    %23 = tpu.matmul %21, %22, %cst_7 {dimension_numbers = #tpu.dot_dimension_numbers<[1], [0], [0], [1], [0, 0, 1, 1], [], []>} : vector<8x128xbf16>, vector<128x128xbf16>, vector<8x128xf32> -> vector<8x128xf32>
    %c0_8 = arith.constant 0 : index
    %c0_9 = arith.constant 0 : index
    %24 = vector.load %arg5[%c0_8, %c0_9] : memref<1x128xf32, #tpu.memory_space<vmem>>, vector<1x128xf32>
    %25 = vector.broadcast %24 : vector<1x128xf32> to vector<8x128xf32>
    %26 = arith.addf %23, %25 : vector<8x128xf32>
    %c0_10 = arith.constant 0 : index
    %c0_11 = arith.constant 0 : index
    %27 = vector.load %arg6[%c0_10, %c0_11] : memref<8x128xf32, #tpu.memory_space<vmem>>, vector<8x128xf32>
    tpu.vector_store %arg6[%c0_10, %c0_11], %26 {strides = array<i32>} : memref<8x128xf32, #tpu.memory_space<vmem>>, vector<8x128xf32>,
    return
  }
  func.func @transform_0(%arg0: i32) -> (i32, i32) {
    %c0_i32 = arith.constant 0 : i32
    %c0_i32_0 = arith.constant 0 : i32
    return %arg0, %c0_i32 : i32, i32
  }
  func.func @transform_1(%arg0: i32) -> (i32, i32) {
    %c0_i32 = arith.constant 0 : i32
    %c0_i32_0 = arith.constant 0 : i32
    %c0_i32_1 = arith.constant 0 : i32
    return %c0_i32, %c0_i32_0 : i32, i32
  }
  func.func @transform_2(%arg0: i32) -> (i32, i32) {
    %c0_i32 = arith.constant 0 : i32
    %c0_i32_0 = arith.constant 0 : i32
    %c0_i32_1 = arith.constant 0 : i32
    return %c0_i32, %c0_i32_0 : i32, i32
  }
  func.func @transform_3(%arg0: i32) -> (i32, i32) {
    %c0_i32 = arith.constant 0 : i32
    %c0_i32_0 = arith.constant 0 : i32
    %c0_i32_1 = arith.constant 0 : i32
    return %c0_i32, %c0_i32_0 : i32, i32
  }
  func.func @transform_4(%arg0: i32) -> (i32, i32) {
    %c0_i32 = arith.constant 0 : i32
    %c0_i32_0 = arith.constant 0 : i32
    %c0_i32_1 = arith.constant 0 : i32
    return %c0_i32, %c0_i32_0 : i32, i32
  }
  func.func @transform_5(%arg0: i32) -> (i32, i32) {
    %c0_i32 = arith.constant 0 : i32
    %c0_i32_0 = arith.constant 0 : i32
    return %arg0, %c0_i32 : i32, i32
  }
}

</mosaic_0001>

<llo_original>
// kernel: tpu_custom_call.1
$region0: #{tpu_custom_call.1}
  #allocation0 [shape = 'u32[]', space=smem, size = 0x4, offset = 0x4, fixed_abs, tag = 'smem constant byte address 0x4 - core index']
  #allocation1 [shape = 'u32[144,128]{1,0:T(1,128)}', space=vmem, size = 0x12000, scoped, tag = 'internal scratch']
  %s0 = inlined_call_operand.vmem [shape: s32[8,2], index: 0, kind: input, shape index: {}]
  %s1 = inlined_call_operand.hbm [shape: bf16[256,128], index: 1, kind: input, shape index: {}]
  %s2 = inlined_call_operand.vmem [shape: f32[1,128], index: 2, kind: input, shape index: {}]
  %s3 = inlined_call_operand.hbm [shape: bf16[128,128], index: 3, kind: input, shape index: {}]
  %s4 = inlined_call_operand.vmem [shape: f32[1,128], index: 4, kind: input, shape index: {}]
  %s5 = inlined_call_operand.hbm [shape: f32[8,128], index: 5, kind: output, shape index: {}]
  %s6 = sld [smem:[#allocation0]]
  $region38: #{tpu_custom_call.1} parent=0
    _
  %s8 = ssub.s32 1, %s6
  %s9 = scalar_select 0, %s8, %s6
  $region1: #{tpu_custom_call.1} parent=0
    #allocation2 [shape = 'u8[65536]{0}', space=vmem, size = 0x10000, scoped, tag = 'input window, operand 1, single buffered']
    #allocation3 [shape = 's32[1]{0}', space=sflag, size = 0x4, scoped, tag = 'scoped memory for tpu_custom_call.1']
    #allocation4 [shape = 's32[1]{0}', space=sflag, size = 0x4, scoped, tag = 'scoped memory for tpu_custom_call.1']
    #allocation5 [shape = 'u8[32768]{0}', space=vmem, size = 0x8000, scoped, tag = 'input window, operand 3, single buffered']
    #allocation6 [shape = 's32[1]{0}', space=sflag, size = 0x4, scoped, tag = 'scoped memory for tpu_custom_call.1']
    #allocation7 [shape = 'u8[4096]{0}', space=vmem, size = 0x1000, scoped, tag = 'output window, operand 0, single buffered']
    %10 = vsyncpa [#allocation3], 0
    %11 = vsyncpa [#allocation6], 0
    %12 = vsyncpa [#allocation4], 0
    // Predicated region
    $region2: #{tpu_custom_call.1} parent=1 // pred_check
      _
    $region3: #{tpu_custom_call.1} parent=1 // pred_check_branch
      %14 = sbr.rel (0) target = $region5
    $region4: #{tpu_custom_call.1} parent=1 // pred_region
      _
    $region5: #{tpu_custom_call.1} parent=1 // pred_fallthru
      _
    // Predicated region
    $region6: #{tpu_custom_call.1} parent=1 // pred_check
      _
    $region7: #{tpu_custom_call.1} parent=1 // pred_check_branch
      %16 = sbr.rel (0) target = $region9
    $region8: #{tpu_custom_call.1} parent=1 // pred_region
      %s18 = ssub.s32 2048, 2048
      %19 = vsyncadd [#allocation3], %s18
      %s20 = sshll.u32 [#allocation2], 4
      %s21 = int_to_ptr.vmem [resolvable:$true] %s20
      %26 = dma.hbm_to_vmem [thread:$0]  %s1, 2048, %s21, [#allocation3], 64, 64, 4
    $region9: #{tpu_custom_call.1} parent=1 // pred_fallthru
      _
    // Predicated region
    $region10: #{tpu_custom_call.1} parent=1 // pred_check
      _
    $region11: #{tpu_custom_call.1} parent=1 // pred_check_branch
      %28 = sbr.rel (0) target = $region13
    $region12: #{tpu_custom_call.1} parent=1 // pred_region
      _
    $region13: #{tpu_custom_call.1} parent=1 // pred_fallthru
      _
    // Predicated region
    $region14: #{tpu_custom_call.1} parent=1 // pred_check
      _
    $region15: #{tpu_custom_call.1} parent=1 // pred_check_branch
      %30 = sbr.rel (0) target = $region17
    $region16: #{tpu_custom_call.1} parent=1 // pred_region
      %s32 = ssub.s32 1024, 1024
      %33 = vsyncadd [#allocation6], %s32
      %s34 = sshll.u32 [#allocation5], 4
      %s35 = int_to_ptr.vmem [resolvable:$true] %s34
      %40 = dma.hbm_to_vmem [thread:$0]  %s3, 1024, %s35, [#allocation6], 64, 64, 4
    $region17: #{tpu_custom_call.1} parent=1 // pred_fallthru
      _
    // Predicated region
    $region18: #{tpu_custom_call.1} parent=1 // pred_check
      _
    $region19: #{tpu_custom_call.1} parent=1 // pred_check_branch
      %42 = sbr.rel (0) target = $region21
    $region20: #{tpu_custom_call.1} parent=1 // pred_region
      _
    $region21: #{tpu_custom_call.1} parent=1 // pred_fallthru
      _
    // Predicated region
    $region22: #{tpu_custom_call.1} parent=1 // pred_check
      _
    $region23: #{tpu_custom_call.1} parent=1 // pred_check_branch
      %44 = sbr.rel (0) target = $region25
    $region24: #{tpu_custom_call.1} parent=1 // pred_region
      %45 = dma.done [#allocation3], 2048
    $region25: #{tpu_custom_call.1} parent=1 // pred_fallthru
      _
    // Predicated region
    $region26: #{tpu_custom_call.1} parent=1 // pred_check
      _
    $region27: #{tpu_custom_call.1} parent=1 // pred_check_branch
      %47 = sbr.rel (0) target = $region29
    $region28: #{tpu_custom_call.1} parent=1 // pred_region
      %48 = dma.done [#allocation6], 1024
    $region29: #{tpu_custom_call.1} parent=1 // pred_fallthru
      _
    %v50 = vld [vmem:[%s0] sm:$0xff]
    %v51 = vlaneseq
    %v52 = vand.u32 %v51, 127
    %v53 = vadd.s32 %v52, 128
    %54 = vset.pattern.permute.xlu0 0
    %55 = vperm.xlu0 %54, %v50
    %v56 = vpop.permute.xlu0 %55
    %vm57 = vcmp.eq.s32.totalorder %v52, %v56
    %vm58 = vcmp.eq.s32.totalorder %v53, %v56
    %v59 = vsel %vm57, 1, 0
    %v60 = vsel %vm58, 1, 0
    %v61 = vcvt.s32.f32 %v59
    %v62 = vcvt.s32.f32 %v60
    %v63 = vpack.c.bf16 %v61, %v61
    %v64 = vpack.c.bf16 %v62, %v62
    %65 = vset.pattern.permute.xlu0 1
    %66 = vperm.xlu0 %65, %v50
    %v67 = vpop.permute.xlu0 %66
    %vm68 = vcmp.eq.s32.totalorder %v52, %v67
    %vm69 = vcmp.eq.s32.totalorder %v53, %v67
    %v70 = vsel %vm68, 1, 0
    %v71 = vsel %vm69, 1, 0
    %v72 = vcvt.s32.f32 %v70
    %v73 = vcvt.s32.f32 %v71
    %v74 = vpack.c.bf16 %v72, %v72
    %v75 = vpack.c.bf16 %v73, %v73
    %v76 = vadd.bf16 %v63, %v74
    %v77 = vadd.bf16 %v64, %v75
    %v78 = vld [vmem:[#allocation2] sm:$0xf]
    %v79 = vld [vmem:[#allocation2 + $0x4] sm:$0xf]
    %v80 = vld [vmem:[#allocation2 + $0x8] sm:$0xf]
    %v81 = vld [vmem:[#allocation2 + $0xc] sm:$0xf]
    %v82 = vld [vmem:[#allocation2 + $0x10] sm:$0xf]
    %v83 = vld [vmem:[#allocation2 + $0x14] sm:$0xf]
    %v84 = vld [vmem:[#allocation2 + $0x18] sm:$0xf]
    %v85 = vld [vmem:[#allocation2 + $0x1c] sm:$0xf]
    %v86 = vld [vmem:[#allocation2 + $0x20] sm:$0xf]
    %v87 = vld [vmem:[#allocation2 + $0x24] sm:$0xf]
    %v88 = vld [vmem:[#allocation2 + $0x28] sm:$0xf]
    %v89 = vld [vmem:[#allocation2 + $0x2c] sm:$0xf]
    %v90 = vld [vmem:[#allocation2 + $0x30] sm:$0xf]
    %v91 = vld [vmem:[#allocation2 + $0x34] sm:$0xf]
    %v92 = vld [vmem:[#allocation2 + $0x38] sm:$0xf]
    %v93 = vld [vmem:[#allocation2 + $0x3c] sm:$0xf]
    %v94 = vld [vmem:[#allocation2 + $0x40] sm:$0xf]
    %v95 = vld [vmem:[#allocation2 + $0x44] sm:$0xf]
    %v96 = vld [vmem:[#allocation2 + $0x48] sm:$0xf]
    %v97 = vld [vmem:[#allocation2 + $0x4c] sm:$0xf]
    %v98 = vld [vmem:[#allocation2 + $0x50] sm:$0xf]
    %v99 = vld [vmem:[#allocation2 + $0x54] sm:$0xf]
    %v100 = vld [vmem:[#allocation2 + $0x58] sm:$0xf]
    %v101 = vld [vmem:[#allocation2 + $0x5c] sm:$0xf]
    %v102 = vld [vmem:[#allocation2 + $0x60] sm:$0xf]
    %v103 = vld [vmem:[#allocation2 + $0x64] sm:$0xf]
    %v104 = vld [vmem:[#allocation2 + $0x68] sm:$0xf]
    %v105 = vld [vmem:[#allocation2 + $0x6c] sm:$0xf]
    %v106 = vld [vmem:[#allocation2 + $0x70] sm:$0xf]
    %v107 = vld [vmem:[#allocation2 + $0x74] sm:$0xf]
    %v108 = vld [vmem:[#allocation2 + $0x78] sm:$0xf]
    %v109 = vld [vmem:[#allocation2 + $0x7c] sm:$0xf]
    %v110 = vld [vmem:[%s2] sm:$0x1]
    %v112 = vlaneseq
    %v113 = vshrl.u32 %v112, 7
    %v114 = vsub.s32 0, %v113
    %v115 = vrot.slane %v110, %v114
    %v149 = vunpack.c.l.b16 %v78
    %v150 = vunpack.c.l.b16 %v79
    %v151 = vunpack.c.l.b16 %v80
    %v152 = vunpack.c.l.b16 %v81
    %v153 = vunpack.c.l.b16 %v82
    %v154 = vunpack.c.l.b16 %v83
    %v155 = vunpack.c.l.b16 %v84
    %v156 = vunpack.c.l.b16 %v85
    %v157 = vunpack.c.l.b16 %v86
    %v158 = vunpack.c.l.b16 %v87
    %v159 = vunpack.c.l.b16 %v88
    %v160 = vunpack.c.l.b16 %v89
    %v161 = vunpack.c.l.b16 %v90
    %v162 = vunpack.c.l.b16 %v91
    %v163 = vunpack.c.l.b16 %v92
    %v164 = vunpack.c.l.b16 %v93
    %v165 = vunpack.c.l.b16 %v94
    %v166 = vunpack.c.l.b16 %v95
    %v167 = vunpack.c.l.b16 %v96
    %v168 = vunpack.c.l.b16 %v97
    %v169 = vunpack.c.l.b16 %v98
    %v170 = vunpack.c.l.b16 %v99
    %v171 = vunpack.c.l.b16 %v100
    %v172 = vunpack.c.l.b16 %v101
    %v173 = vunpack.c.l.b16 %v102
    %v174 = vunpack.c.l.b16 %v103
    %v175 = vunpack.c.l.b16 %v104
    %v176 = vunpack.c.l.b16 %v105
    %v177 = vunpack.c.l.b16 %v106
    %v178 = vunpack.c.l.b16 %v107
    %v179 = vunpack.c.l.b16 %v108
    %v180 = vunpack.c.l.b16 %v109
    %v181 = vpack.c.b16 %v150, %v149
    %v182 = vpack.c.b16 %v152, %v151
    %v183 = vpack.c.b16 %v154, %v153
    %v184 = vpack.c.b16 %v156, %v155
    %v185 = vpack.c.b16 %v158, %v157
    %v186 = vpack.c.b16 %v160, %v159
    %v187 = vpack.c.b16 %v162, %v161
    %v188 = vpack.c.b16 %v164, %v163
    %v189 = vpack.c.b16 %v166, %v165
    %v190 = vpack.c.b16 %v168, %v167
    %v191 = vpack.c.b16 %v170, %v169
    %v192 = vpack.c.b16 %v172, %v171
    %v193 = vpack.c.b16 %v174, %v173
    %v194 = vpack.c.b16 %v176, %v175
    %v195 = vpack.c.b16 %v178, %v177
    %v196 = vpack.c.b16 %v180, %v179
    %213 = vmatprep.subr.bf16.mxu0 0
    %214 = vmatpush1.bf16.msra.mxu0 %v188
    %215 = vmatprep.subr.bf16.mxu0 0
    %216 = vmatpush1.bf16.msra.mxu0 %v187
    %217 = vmatprep.subr.bf16.mxu0 0
    %218 = vmatpush1.bf16.msra.mxu0 %v186
    %219 = vmatprep.subr.bf16.mxu0 0
    %220 = vmatpush1.bf16.msra.mxu0 %v185
    %221 = vmatprep.subr.bf16.mxu0 0
    %222 = vmatpush1.bf16.msra.mxu0 %v184
    %223 = vmatprep.subr.bf16.mxu0 0
    %224 = vmatpush1.bf16.msra.mxu0 %v183
    %225 = vmatprep.subr.bf16.mxu0 0
    %226 = vmatpush1.bf16.msra.mxu0 %v182
    %227 = vmatprep.subr.bf16.mxu0 0
    %228 = vmatpush1.bf16.msra.mxu0 %v181
    %229 = vmatprep.subr.bf16.mxu0 0
    %230 = vmatpush2.bf16.msra.mxu0 %v196
    %231 = vmatprep.subr.bf16.mxu0 0
    %232 = vmatpush2.bf16.msra.mxu0 %v195
    %233 = vmatprep.subr.bf16.mxu0 0
    %234 = vmatpush2.bf16.msra.mxu0 %v194
    %235 = vmatprep.subr.bf16.mxu0 0
    %236 = vmatpush2.bf16.msra.mxu0 %v193
    %237 = vmatprep.subr.bf16.mxu0 0
    %238 = vmatpush2.bf16.msra.mxu0 %v192
    %239 = vmatprep.subr.bf16.mxu0 0
    %240 = vmatpush2.bf16.msra.mxu0 %v191
    %241 = vmatprep.subr.bf16.mxu0 0
    %242 = vmatpush2.bf16.msra.mxu0 %v190
    %243 = vmatprep.subr.bf16.mxu0 0
    %244 = vmatpush2.bf16.msra.mxu0 %v189
    %245 = vmatprep.mubr.bf16.mxu0 %v77
    %246 = vmatmul.mubr.bf16.gmra.mxu0 %v76
    %v247 = vpop.f32.mrf.mxu0
    %v248 = vadd.f32 %v115, %v247
    %v249 = vpop.f32.mrf.mxu0
    %v250 = vpop.f32.mrf.mxu0
    %v251 = vpop.f32.mrf.mxu0
    %252 = vdwg.mxu0
    %v253 = vtanh.pop %v248
    %v254 = vpack.c.bf16 %v253, %v253
    %v255 = vld [vmem:[#allocation5] sm:$0xf]
    %v256 = vld [vmem:[#allocation5 + $0x4] sm:$0xf]
    %v257 = vld [vmem:[#allocation5 + $0x8] sm:$0xf]
    %v258 = vld [vmem:[#allocation5 + $0xc] sm:$0xf]
    %v259 = vld [vmem:[#allocation5 + $0x10] sm:$0xf]
    %v260 = vld [vmem:[#allocation5 + $0x14] sm:$0xf]
    %v261 = vld [vmem:[#allocation5 + $0x18] sm:$0xf]
    %v262 = vld [vmem:[#allocation5 + $0x1c] sm:$0xf]
    %v263 = vld [vmem:[#allocation5 + $0x20] sm:$0xf]
    %v264 = vld [vmem:[#allocation5 + $0x24] sm:$0xf]
    %v265 = vld [vmem:[#allocation5 + $0x28] sm:$0xf]
    %v266 = vld [vmem:[#allocation5 + $0x2c] sm:$0xf]
    %v267 = vld [vmem:[#allocation5 + $0x30] sm:$0xf]
    %v268 = vld [vmem:[#allocation5 + $0x34] sm:$0xf]
    %v269 = vld [vmem:[#allocation5 + $0x38] sm:$0xf]
    %v270 = vld [vmem:[#allocation5 + $0x3c] sm:$0xf]
    %v271 = vld [vmem:[%s4] sm:$0x1]
    %v273 = vlaneseq
    %v274 = vshrl.u32 %v273, 7
    %v275 = vsub.s32 0, %v274
    %v276 = vrot.slane %v271, %v275
    %v294 = vunpack.c.l.b16 %v255
    %v295 = vunpack.c.l.b16 %v256
    %v296 = vunpack.c.l.b16 %v257
    %v297 = vunpack.c.l.b16 %v258
    %v298 = vunpack.c.l.b16 %v259
    %v299 = vunpack.c.l.b16 %v260
    %v300 = vunpack.c.l.b16 %v261
    %v301 = vunpack.c.l.b16 %v262
    %v302 = vunpack.c.l.b16 %v263
    %v303 = vunpack.c.l.b16 %v264
    %v304 = vunpack.c.l.b16 %v265
    %v305 = vunpack.c.l.b16 %v266
    %v306 = vunpack.c.l.b16 %v267
    %v307 = vunpack.c.l.b16 %v268
    %v308 = vunpack.c.l.b16 %v269
    %v309 = vunpack.c.l.b16 %v270
    %v310 = vpack.c.b16 %v295, %v294
    %v311 = vpack.c.b16 %v297, %v296
    %v312 = vpack.c.b16 %v299, %v298
    %v313 = vpack.c.b16 %v301, %v300
    %v314 = vpack.c.b16 %v303, %v302
    %v315 = vpack.c.b16 %v305, %v304
    %v316 = vpack.c.b16 %v307, %v306
    %v317 = vpack.c.b16 %v309, %v308
    %326 = vmatprep.subr.bf16.mxu0 0
    %327 = vmatpush1.bf16.msra.mxu0 %v317
    %328 = vmatprep.subr.bf16.mxu0 0
    %329 = vmatpush1.bf16.msra.mxu0 %v316
    %330 = vmatprep.subr.bf16.mxu0 0
    %331 = vmatpush1.bf16.msra.mxu0 %v315
    %332 = vmatprep.subr.bf16.mxu0 0
    %333 = vmatpush1.bf16.msra.mxu0 %v314
    %334 = vmatprep.subr.bf16.mxu0 0
    %335 = vmatpush1.bf16.msra.mxu0 %v313
    %336 = vmatprep.subr.bf16.mxu0 0
    %337 = vmatpush1.bf16.msra.mxu0 %v312
    %338 = vmatprep.subr.bf16.mxu0 0
    %339 = vmatpush1.bf16.msra.mxu0 %v311
    %340 = vmatprep.subr.bf16.mxu0 0
    %341 = vmatpush1.bf16.msra.mxu0 %v310
    %342 = vmatprep.subr.bf16.mxu0 0
    %343 = vmatpush2.bf16.msra.mxu0 0
    %344 = vmatprep.subr.bf16.mxu0 0
    %345 = vmatpush2.bf16.msra.mxu0 0
    %346 = vmatprep.subr.bf16.mxu0 0
    %347 = vmatpush2.bf16.msra.mxu0 0
    %348 = vmatprep.subr.bf16.mxu0 0
    %349 = vmatpush2.bf16.msra.mxu0 0
    %350 = vmatprep.subr.bf16.mxu0 0
    %351 = vmatpush2.bf16.msra.mxu0 0
    %352 = vmatprep.subr.bf16.mxu0 0
    %353 = vmatpush2.bf16.msra.mxu0 0
    %354 = vmatprep.subr.bf16.mxu0 0
    %355 = vmatpush2.bf16.msra.mxu0 0
    %356 = vmatprep.subr.bf16.mxu0 0
    %357 = vmatpush2.bf16.msra.mxu0 0
    %358 = vmatprep.mubr.bf16.mxu0 0
    %359 = vmatmul.mubr.bf16.gmra.mxu0 %v254
    %v360 = vpop.f32.mrf.mxu0
    %v361 = vadd.f32 %v276, %v360
    %v362 = vpop.f32.mrf.mxu0
    %v363 = vpop.f32.mrf.mxu0
    %v364 = vpop.f32.mrf.mxu0
    %365 = vdwg.mxu0
    %366 = vst [vmem:[#allocation7] sm:$0xff] %v361
    // Predicated region
    $region30: #{tpu_custom_call.1} parent=1 // pred_check
      _
    $region31: #{tpu_custom_call.1} parent=1 // pred_check_branch
      %368 = sbr.rel (0) target = $region33
    $region32: #{tpu_custom_call.1} parent=1 // pred_region
      %s370 = ssub.s32 128, 128
      %371 = vsyncadd [#allocation4], %s370
      %s373 = sshll.u32 [#allocation7], 4
      %s374 = int_to_ptr.vmem [resolvable:$true] %s373
      %376 = dma.vmem_to_hbm [thread:$0]  %s374, 128, %s5, [#allocation4]
    $region33: #{tpu_custom_call.1} parent=1 // pred_fallthru
      _
    // Predicated region
    $region34: #{tpu_custom_call.1} parent=1 // pred_check
      _
    $region35: #{tpu_custom_call.1} parent=1 // pred_check_branch
      %378 = sbr.rel (0) target = $region37
    $region36: #{tpu_custom_call.1} parent=1 // pred_region
      %379 = dma.done [#allocation4], 128
    $region37: #{tpu_custom_call.1} parent=1 // pred_fallthru
      _
    %380 = vsyncpa [#allocation3], 1
    %381 = vsyncpa [#allocation6], 1
    %382 = vsyncpa [#allocation4], 1

</llo_original>
